<compile_context>
chip_gen: v5e
topology: v5e:2x2
jax: 0.10.0
libtpu: 0.0.40
codegen_flags: <defaults>
</compile_context>

<pallas_src>
import functools

import jax
import jax.numpy as jnp
from jax.experimental import pallas as pl
from jax.experimental.pallas import tpu as pltpu


def _lstm_fc_kernel(x_ref, wg_ref, wfc_ref, out_ref):
    """Single LSTM step (h0 = c0 = 0) fused with the final Linear layer.

    x_ref   : (B, D)        f32 activations
    wg_ref  : (D+1, 3H)     lane-packed gate weights [i | g | o]; last row = b_ih+b_hh
    wfc_ref : (H+1, C)      FC weight (transposed); last row = b_fc
    out_ref : (B, C)        logits
    """
    x = x_ref[...]                                   # (B, D)
    D = x.shape[1]
    H = wfc_ref.shape[0] - 1

    # One MXU pass for all three live gates; bias is the folded last row.
    gates = (jnp.dot(x, wg_ref[:D, :], preferred_element_type=jnp.float32)
             + wg_ref[D:D + 1, :])                   # (B, 3H)

    # Activations over the whole vreg; per-gate lane slices afterwards.
    sig = jax.nn.sigmoid(gates)
    th = jnp.tanh(gates)
    i_g = sig[:, 0 * H:1 * H]                        # input gate
    g_g = th[:, 1 * H:2 * H]                         # cell candidate
    o_g = sig[:, 2 * H:3 * H]                        # output gate

    # c0 == 0 -> forget gate contributes nothing; c = i * g.
    h = o_g * jnp.tanh(i_g * g_g)                    # (B, H)

    out_ref[...] = (jnp.dot(h, wfc_ref[:H, :], preferred_element_type=jnp.float32)
                    + wfc_ref[H:H + 1, :])


def pack_params(params, hidden_size):
    """One-time preprocessing of PyTorch-layout params (hoisted off the hot path).

    Returns kernel-ready arrays:
      wg_aug  : (D+1, 3H)  [i|g|o] slabs of W_ih^T stacked along lanes,
                           last row = (b_ih + b_hh) for those gates.
      wfc_aug : (H+1, C)   W_fc^T with b_fc appended as the last row.
    """
    w_ih, w_hh, b_ih, b_hh, w_fc, b_fc = params
    del w_hh  # h0 == 0 => the recurrent matmul vanishes for a single step.
    H = hidden_size
    C = w_fc.shape[0]

    b = b_ih + b_hh
    # PyTorch gate order in W_ih rows: [i, f, g, o]; drop f (dead since c0 == 0).
    w_gates = jnp.concatenate([w_ih[0 * H:1 * H].T,      # i
                               w_ih[2 * H:3 * H].T,      # g
                               w_ih[3 * H:4 * H].T],     # o
                              axis=1)                    # (D, 3H)
    b_gates = jnp.concatenate([b[0 * H:1 * H],
                               b[2 * H:3 * H],
                               b[3 * H:4 * H]]).reshape(1, 3 * H)
    wg_aug = jnp.concatenate([w_gates, b_gates], axis=0).astype(jnp.float32)

    wfc_aug = jnp.concatenate([w_fc.T, b_fc.reshape(1, C)],
                              axis=0).astype(jnp.float32)    # (H+1, C)
    return (wg_aug, wfc_aug)


@jax.jit
def lstm_forward(x, packed):
    """x: (B, input_size) f32, packed: output of pack_params. Returns (B, num_classes).

    NOTE: valid only for the module's single-timestep forward with h0 = c0 = 0.
    """
    wg_aug, wfc_aug = packed
    B = x.shape[0]
    C = wfc_aug.shape[1]

    def vmem():
        return pl.BlockSpec(memory_space=pltpu.MemorySpace.VMEM)

    return pl.pallas_call(
        _lstm_fc_kernel,
        out_shape=jax.ShapeDtypeStruct((B, C), jnp.float32),
        in_specs=[vmem(), vmem(), vmem()],
        out_specs=vmem(),
    )(x, wg_aug, wfc_aug)


def init_params(key, input_size, hidden_size, num_classes):
    """PyTorch-style raw parameters (same init ranges as nn.LSTM / nn.Linear)."""
    ks = jax.random.split(key, 6)
    k = 1.0 / jnp.sqrt(hidden_size)
    w_ih = jax.random.uniform(ks[0], (4 * hidden_size, input_size), jnp.float32, -k, k)
    w_hh = jax.random.uniform(ks[1], (4 * hidden_size, hidden_size), jnp.float32, -k, k)
    b_ih = jax.random.uniform(ks[2], (4 * hidden_size,), jnp.float32, -k, k)
    b_hh = jax.random.uniform(ks[3], (4 * hidden_size,), jnp.float32, -k, k)
    kf = 1.0 / jnp.sqrt(hidden_size)
    w_fc = jax.random.uniform(ks[4], (num_classes, hidden_size), jnp.float32, -kf, kf)
    b_fc = jax.random.uniform(ks[5], (num_classes,), jnp.float32, -kf, kf)
    return (w_ih, w_hh, b_ih, b_hh, w_fc, b_fc)


def lstm_reference(x, params, hidden_size):
    """Pure-JAX reference matching PyTorch nn.LSTM (1 step, h0=c0=0) + Linear."""
    w_ih, w_hh, b_ih, b_hh, w_fc, b_fc = params
    H = hidden_size
    h0 = jnp.zeros((x.shape[0], H), jnp.float32)
    c0 = jnp.zeros((x.shape[0], H), jnp.float32)
    gates = x @ w_ih.T + b_ih + h0 @ w_hh.T + b_hh
    i = jax.nn.sigmoid(gates[:, 0 * H:1 * H])
    f = jax.nn.sigmoid(gates[:, 1 * H:2 * H])
    g = jnp.tanh(gates[:, 2 * H:3 * H])
    o = jax.nn.sigmoid(gates[:, 3 * H:4 * H])
    c = f * c0 + i * g
    h = o * jnp.tanh(c)
    return h @ w_fc.T + b_fc


if __name__ == "__main__":
    batch = 2
    input_size = 16
    hidden_size = 32
    num_classes = 10

    key = jax.random.PRNGKey(0)
    kx, kp = jax.random.split(key)
    x = jax.random.normal(kx, (batch, input_size), jnp.float32)
    params = init_params(kp, input_size, hidden_size, num_classes)

    # One-time weight preprocessing (hoisted out of the steady-state path).
    packed = jax.tree_util.tree_map(jax.block_until_ready,
                                    pack_params(params, hidden_size))

    out = lstm_forward(x, packed)
    out = jax.block_until_ready(out)

    ref = lstm_reference(x, params, hidden_size)
    assert out.shape == (batch, num_classes)
    assert jnp.allclose(out, ref, atol=1e-5, rtol=1e-5), "mismatch vs reference"

    print("KERNEL_OK")
</pallas_src>

<mosaic_0001>
module attributes {stable_mosaic.version = 11 : i64} {
  func.func @_lstm_fc_kernel(%arg0: memref<2x16xf32, #tpu.memory_space<vmem>>, %arg1: memref<17x96xf32, #tpu.memory_space<vmem>>, %arg2: memref<33x10xf32, #tpu.memory_space<vmem>>, %arg3: memref<2x10xf32, #tpu.memory_space<vmem>>) attributes {dimension_semantics = [], scalar_prefetch = 0 : i64, scratch_operands = 0 : i64, tpu.core_type = #tpu.core_type<tc>} {
    %c0 = arith.constant 0 : index
    %c0_0 = arith.constant 0 : index
    %0 = vector.load %arg0[%c0, %c0_0] : memref<2x16xf32, #tpu.memory_space<vmem>>, vector<2x16xf32>
    %c0_1 = arith.constant 0 : index
    %c0_2 = arith.constant 0 : index
    %1 = vector.load %arg1[%c0_1, %c0_2] : memref<17x96xf32, #tpu.memory_space<vmem>>, vector<16x96xf32>
    %cst = arith.constant dense<0.000000e+00> : vector<2x96xf32>
    %2 = tpu.matmul %0, %1, %cst {dimension_numbers = #tpu.dot_dimension_numbers<[1], [0], [0], [1], [0, 0, 1, 1], [], []>} : vector<2x16xf32>, vector<16x96xf32>, vector<2x96xf32> -> vector<2x96xf32>
    %c16 = arith.constant 16 : index
    %c0_3 = arith.constant 0 : index
    %3 = vector.load %arg1[%c16, %c0_3] : memref<17x96xf32, #tpu.memory_space<vmem>>, vector<1x96xf32>
    %4 = vector.broadcast %3 : vector<1x96xf32> to vector<2x96xf32>
    %5 = arith.addf %2, %4 : vector<2x96xf32>
    %6 = arith.negf %5 : vector<2x96xf32>
    %7 = math.exp %6 : vector<2x96xf32>
    %cst_4 = arith.constant 1.000000e+00 : f32
    %8 = vector.broadcast %cst_4 : f32 to vector<2x96xf32>
    %9 = arith.addf %8, %7 : vector<2x96xf32>
    %10 = arith.divf %8, %9 : vector<2x96xf32>
    %11 = math.tanh %5 : vector<2x96xf32>
    %12 = vector.extract_strided_slice %10 {offsets = [0, 0], sizes = [2, 32], strides = [1, 1]} : vector<2x96xf32> to vector<2x32xf32>
    %13 = vector.extract_strided_slice %11 {offsets = [0, 32], sizes = [2, 32], strides = [1, 1]} : vector<2x96xf32> to vector<2x32xf32>
    %14 = vector.extract_strided_slice %10 {offsets = [0, 64], sizes = [2, 32], strides = [1, 1]} : vector<2x96xf32> to vector<2x32xf32>
    %15 = arith.mulf %12, %13 : vector<2x32xf32>
    %16 = math.tanh %15 : vector<2x32xf32>
    %17 = arith.mulf %14, %16 : vector<2x32xf32>
    %c0_5 = arith.constant 0 : index
    %c0_6 = arith.constant 0 : index
    %18 = vector.load %arg2[%c0_5, %c0_6] : memref<33x10xf32, #tpu.memory_space<vmem>>, vector<32x10xf32>
    %cst_7 = arith.constant dense<0.000000e+00> : vector<2x10xf32>
    %19 = tpu.matmul %17, %18, %cst_7 {dimension_numbers = #tpu.dot_dimension_numbers<[1], [0], [0], [1], [0, 0, 1, 1], [], []>} : vector<2x32xf32>, vector<32x10xf32>, vector<2x10xf32> -> vector<2x10xf32>
    %c32 = arith.constant 32 : index
    %c0_8 = arith.constant 0 : index
    %20 = vector.load %arg2[%c32, %c0_8] : memref<33x10xf32, #tpu.memory_space<vmem>>, vector<1x10xf32>
    %21 = vector.broadcast %20 : vector<1x10xf32> to vector<2x10xf32>
    %22 = arith.addf %19, %21 : vector<2x10xf32>
    %c0_9 = arith.constant 0 : index
    %c0_10 = arith.constant 0 : index
    %23 = vector.load %arg3[%c0_9, %c0_10] : memref<2x10xf32, #tpu.memory_space<vmem>>, vector<2x10xf32>
    tpu.vector_store %arg3[%c0_9, %c0_10], %22 {strides = array<i32>} : memref<2x10xf32, #tpu.memory_space<vmem>>, vector<2x10xf32>,
    return
  }
}

</mosaic_0001>

<llo_original>
// kernel: lstm_forward.1
$region0: #{lstm_forward.1}
  #allocation0 [shape = 'u32[]', space=smem, size = 0x4, offset = 0x4, fixed_abs, tag = 'smem constant byte address 0x4 - core index']
  #allocation1 [shape = 'u32[72,128]{1,0:T(1,128)}', space=vmem, size = 0x9000, scoped, tag = 'internal scratch']
  %s0 = inlined_call_operand.vmem [shape: f32[2,16], index: 0, kind: input, shape index: {}]
  %s1 = inlined_call_operand.vmem [shape: f32[17,96], index: 1, kind: input, shape index: {}]
  %s2 = inlined_call_operand.vmem [shape: f32[33,10], index: 2, kind: input, shape index: {}]
  %s3 = inlined_call_operand.hbm [shape: f32[2,10], index: 3, kind: output, shape index: {}]
  %s4 = sld [smem:[#allocation0]]
  $region22: #{lstm_forward.1} parent=0
    _
  %s6 = ssub.s32 1, %s4
  %s7 = scalar_select 0, %s6, %s4
  $region1: #{lstm_forward.1} parent=0
    #allocation2 [shape = 'u8[1024]{0}', space=vmem, size = 0x400, scoped, tag = 'output window, operand 0, single buffered']
    #allocation3 [shape = 's32[1]{0}', space=sflag, size = 0x4, scoped, tag = 'scoped memory for lstm_forward.1']
    %8 = vsyncpa [#allocation3], 0
    // Predicated region
    $region2: #{lstm_forward.1} parent=1 // pred_check
      _
    $region3: #{lstm_forward.1} parent=1 // pred_check_branch
      %10 = sbr.rel (0) target = $region5
    $region4: #{lstm_forward.1} parent=1 // pred_region
      _
    $region5: #{lstm_forward.1} parent=1 // pred_fallthru
      _
    // Predicated region
    $region6: #{lstm_forward.1} parent=1 // pred_check
      _
    $region7: #{lstm_forward.1} parent=1 // pred_check_branch
      %12 = sbr.rel (0) target = $region9
    $region8: #{lstm_forward.1} parent=1 // pred_region
      _
    $region9: #{lstm_forward.1} parent=1 // pred_fallthru
      _
    // Predicated region
    $region10: #{lstm_forward.1} parent=1 // pred_check
      _
    $region11: #{lstm_forward.1} parent=1 // pred_check_branch
      %14 = sbr.rel (0) target = $region13
    $region12: #{lstm_forward.1} parent=1 // pred_region
      _
    $region13: #{lstm_forward.1} parent=1 // pred_fallthru
      _
    %v15 = vld [vmem:[%s0] sm:$0x3]
    %v16 = vld [vmem:[%s1] sm:$0xff]
    %v17 = vld [vmem:[%s1 + $0x8] sm:$0xff]
    %v18 = vld [vmem:[%s1 + $0x10] sm:$0x1]
    %v19 = vperm.slane %v18, 0
    %vm20 = vcmask 130048
    %v22 = vsel %vm20, %v15, 0
    %24 = vmatpush.msra.mxu0 0.0
    %25 = vmatpush.msra.mxu0 0.0
    %26 = vmatpush.msra.mxu0 0.0
    %27 = vmatpush.msra.mxu0 0.0
    %28 = vmatpush.msra.mxu0 0.0
    %29 = vmatpush.msra.mxu0 0.0
    %30 = vmatpush.msra.mxu0 0.0
    %31 = vmatpush.msra.mxu0 0.0
    %32 = vmatpush.msra.mxu0 0.0
    %33 = vmatpush.msra.mxu0 0.0
    %34 = vmatpush.msra.mxu0 0.0
    %35 = vmatpush.msra.mxu0 0.0
    %36 = vmatpush.msra.mxu0 0.0
    %37 = vmatpush.msra.mxu0 0.0
    %38 = vmatpush.msra.mxu0 %v17
    %39 = vmatpush.msra.mxu0 %v16
    %40 = vmatmul.f32.gmra.mxu0 %v22
    %v41 = vpop.f32.mrf.mxu0
    %v42 = vadd.f32 %v19, %v41
    %43 = vdwg.mxu0
    %v44 = vxor.u32 %v42, 2147483648
    %v45 = vmul.f32 %v44, 1.442695
    %v46 = vpow.pop %v45
    %v47 = vadd.f32 %v46, 1.0
    %v48 = vrcp.pop %v47
    %v49 = vmul.f32 %v47, %v48
    %v50 = vsub.f32 1.0, %v49
    %v51 = vmul.f32 %v48, %v50
    %v52 = vadd.f32 %v48, %v51
    %vm53 = vweird.f32 %v47
    %vm54 = vweird.f32 %v48
    %vm55 = vmor %vm53, %vm54
    %v56 = vsel %vm55, %v48, %v52
    %v57 = vand.u32 2147483647, %v47
    %vm58 = vcmp.eq.f32.partialorder %v57, 8.507059e+37
    %v59 = vand.u32 %v47, 2147483648
    %v60 = vor.u32 1.1754944e-38, %v59
    %v61 = vsel %vm58, %v60, %v56
    %v62 = vmul.f32 1.0, %v61
    %v63 = vtanh.pop %v42
    %65 = vrot.lane.b32.xlu0 %v63, 96
    %v66 = vpop.permute.xlu0 %65
    %v68 = vmul.f32 %v62, %v66
    %v69 = vtanh.pop %v68
    %71 = vrot.lane.b32.xlu0 %v69, 64
    %v72 = vpop.permute.xlu0 %71
    %v74 = vmul.f32 %v62, %v72
    %v75 = vld [vmem:[%s2] sm:$0xff]
    %v76 = vld [vmem:[%s2 + $0x8] sm:$0xff]
    %v77 = vld [vmem:[%s2 + $0x10] sm:$0xff]
    %v78 = vld [vmem:[%s2 + $0x18] sm:$0xff]
    %v79 = vld [vmem:[%s2 + $0x20] sm:$0x1]
    %v80 = vperm.slane %v79, 0
    %82 = vrot.lane.b32.xlu0 %v74, 64
    %v83 = vpop.permute.xlu0 %82
    %vm84 = vcmask 261120
    %v85 = vsel %vm84, %v83, 0
    %87 = vmatpush.msra.mxu0 0.0
    %88 = vmatpush.msra.mxu0 0.0
    %89 = vmatpush.msra.mxu0 0.0
    %90 = vmatpush.msra.mxu0 0.0
    %91 = vmatpush.msra.mxu0 0.0
    %92 = vmatpush.msra.mxu0 0.0
    %93 = vmatpush.msra.mxu0 0.0
    %94 = vmatpush.msra.mxu0 0.0
    %95 = vmatpush.msra.mxu0 0.0
    %96 = vmatpush.msra.mxu0 0.0
    %97 = vmatpush.msra.mxu0 0.0
    %98 = vmatpush.msra.mxu0 0.0
    %99 = vmatpush.msra.mxu0 %v78
    %100 = vmatpush.msra.mxu0 %v77
    %101 = vmatpush.msra.mxu0 %v76
    %102 = vmatpush.msra.mxu0 %v75
    %103 = vmatmul.f32.gmra.mxu0 %v85
    %v104 = vpop.f32.mrf.mxu0
    %v105 = vadd.f32 %v80, %v104
    %106 = vdwg.mxu0
    %vm107 = vcmask 74752
    %108 = vst.msk [vmem:[#allocation2] sm:$0x3] %vm107, %v105
    // Predicated region
    $region14: #{lstm_forward.1} parent=1 // pred_check
      _
    $region15: #{lstm_forward.1} parent=1 // pred_check_branch
      %110 = sbr.rel (0) target = $region17
    $region16: #{lstm_forward.1} parent=1 // pred_region
      %112 = vsyncadd [#allocation3], 0
      %s114 = sshll.u32 [#allocation2], 4
      %s115 = int_to_ptr.vmem [resolvable:$true] %s114
      %s116 = sshll.u32 %s3, 4
      %s117 = int_to_ptr.hbm [resolvable:$true] %s116
      %119 = dma.vmem_to_hbm [thread:$0]  %s115, 32, %s117, [#allocation3]
    $region17: #{lstm_forward.1} parent=1 // pred_fallthru
      _
    // Predicated region
    $region18: #{lstm_forward.1} parent=1 // pred_check
      _
    $region19: #{lstm_forward.1} parent=1 // pred_check_branch
      %121 = sbr.rel (0) target = $region21
    $region20: #{lstm_forward.1} parent=1 // pred_region
      %123 = dma.done [#allocation3], 32
    $region21: #{lstm_forward.1} parent=1 // pred_fallthru
      _
    %124 = vsyncpa [#allocation3], 1

</llo_original>
